<compile_context>
chip_gen: v7x
topology: tpu7x:2x2x1
jax: 0.10.0
libtpu: 0.0.40
codegen_flags: <defaults>
</compile_context>

<pallas_src>
import math
import jax
import jax.numpy as jnp
from jax.experimental import pallas as pl

# ---- problem sizes (consistent with the module's __init__ args) -----------
BATCH = 2
SEQ = 8
D_MODEL = 32
N_HEAD = 4
D_HEAD = D_MODEL // N_HEAD
FFN_HIDDEN = 64
LN_EPS = 1e-12          # eps used by the custom LayerNorm in the reference repo
NEG_INF = -1e30

N_TOK = BATCH * SEQ     # rows of the folded (B*S, D) slab
HN = N_HEAD * N_TOK     # rows of the head-folded attention slab


def _layer_norm(x, gamma, beta):
    # x: (N, D); gamma/beta: (1, D); mean/var over last dim (unbiased=False)
    mean = jnp.mean(x, axis=-1, keepdims=True)
    var = jnp.mean((x - mean) ** 2, axis=-1, keepdims=True)
    inv = jax.lax.rsqrt(var + LN_EPS)
    return (x - mean) * inv * gamma + beta


def encoder_layer_kernel(x_ref, wqkv_ref, bqkv_ref, mask_ref, wo_ref,
                         w1_ref, b1_ref, w2_ref, vec_ref, out_ref):
    N, H, Dh = N_TOK, N_HEAD, D_HEAD

    x = x_ref[...].astype(jnp.float32)                      # (N, D)

    # packed small vectors: rows = [b_o, gamma1, beta1, b2, gamma2, beta2]
    vec = vec_ref[...].astype(jnp.float32)                  # (6, D)
    b_o = vec[0:1, :]
    g1 = vec[1:2, :]
    beta1 = vec[2:3, :]
    b2 = vec[3:4, :]
    g2 = vec[4:5, :]
    beta2 = vec[5:6, :]

    # ---- fused QKV: one (N, D) @ (D, 3D) matmul ---------------------------
    # 1/sqrt(Dh) is already folded into the Q columns of wqkv / bqkv.
    qkv = jnp.dot(x, wqkv_ref[...],
                  preferred_element_type=jnp.float32) + bqkv_ref[...]   # (N, 3D)

    # ---- fold heads into rows: (N, H*Dh) -> (H*N, Dh) ---------------------
    def fold(off):
        return jnp.concatenate(
            [qkv[:, off + h * Dh: off + (h + 1) * Dh] for h in range(H)],
            axis=0)

    q_hn = fold(0)                                           # (H*N, Dh)
    k_hn = fold(H * Dh)                                      # (H*N, Dh)
    v_hn = fold(2 * H * Dh)                                  # (H*N, Dh)

    # ---- attention: two MXU calls over the head-folded slab ---------------
    s = jax.lax.dot_general(q_hn, k_hn, (((1,), (1,)), ((), ())),
                            preferred_element_type=jnp.float32)  # (HN, HN)
    # precomputed (batch x head) block-diagonal additive mask bias
    s = s + mask_ref[...]
    # TODO(synk): user-supplied attention mask (mask=None in this forward)
    #             is not applied.
    s = s - jnp.max(s, axis=-1, keepdims=True)
    p = jnp.exp(s)
    p = p / jnp.sum(p, axis=-1, keepdims=True)               # exact softmax
    o_hn = jnp.dot(p, v_hn, preferred_element_type=jnp.float32)  # (HN, Dh)

    # ---- unfold heads back to lanes and project: one (N,D)@(D,D) ----------
    o2d = jnp.concatenate([o_hn[h * N:(h + 1) * N, :] for h in range(H)],
                          axis=1)                            # (N, H*Dh)
    attn = jnp.dot(o2d, wo_ref[...],
                   preferred_element_type=jnp.float32) + b_o  # (N, D)

    # drop1 = identity (eval); residual + LayerNorm 1
    x1 = _layer_norm(attn + x, g1, beta1)

    # ---- position-wise feed-forward ----------------------------------------
    h1 = jnp.dot(x1, w1_ref[...],
                 preferred_element_type=jnp.float32) + b1_ref[...]
    h1 = jnp.maximum(h1, 0.0)            # ReLU (inner FFN dropout = identity)
    h2 = jnp.dot(h1, w2_ref[...],
                 preferred_element_type=jnp.float32) + b2

    # drop2 = identity; residual + LayerNorm 2
    out_ref[...] = _layer_norm(h2 + x1, g2, beta2).astype(out_ref.dtype)


def pack_params(params):
    """One-time parameter packing (out of the per-forward path)."""
    (wq, bq, wk, bk, wv, bv, wo, bo,
     g1, beta1, w1, b1, w2, b2, g2, beta2) = params
    scale = 1.0 / math.sqrt(D_HEAD)

    wqkv = jnp.concatenate([wq * scale, wk, wv], axis=1)     # (D, 3D)
    bqkv = jnp.concatenate([bq * scale, bk, bv], axis=1)     # (1, 3D)
    vec = jnp.concatenate([bo, g1, beta1, b2, g2, beta2], axis=0)  # (6, D)

    # additive (batch x head) block-diagonal mask bias for the head-folded
    # (H*N, H*N) score matrix; row/col index = h*N + b*S + s
    idx = jnp.arange(HN)
    head = idx // N_TOK
    batch = (idx % N_TOK) // SEQ
    same = (head[:, None] == head[None, :]) & (batch[:, None] == batch[None, :])
    mask_bias = jnp.where(same, 0.0, NEG_INF).astype(jnp.float32)  # (HN, HN)

    return (wqkv, bqkv, mask_bias, wo, w1, b1, w2, vec)


@jax.jit
def encoder_layer(x, packed):
    wqkv, bqkv, mask_bias, wo, w1, b1, w2, vec = packed
    B, S, D = x.shape
    out2d = pl.pallas_call(
        encoder_layer_kernel,
        out_shape=jax.ShapeDtypeStruct((B * S, D), x.dtype),
    )(x.reshape(B * S, D), wqkv, bqkv, mask_bias, wo, w1, b1, w2, vec)
    return out2d.reshape(B, S, D)


# ----------------------- pure-JAX reference --------------------------------
def encoder_layer_ref(x, params):
    (wq, bq, wk, bk, wv, bv, wo, bo,
     g1, beta1, w1, b1, w2, b2, g2, beta2) = params

    def ln(z, g, b):
        m = jnp.mean(z, axis=-1, keepdims=True)
        v = jnp.mean((z - m) ** 2, axis=-1, keepdims=True)
        return (z - m) / jnp.sqrt(v + LN_EPS) * g + b

    B, S, D = x.shape
    q = x @ wq + bq
    k = x @ wk + bk
    v = x @ wv + bv
    qh = q.reshape(B, S, N_HEAD, D_HEAD).transpose(0, 2, 1, 3)
    kh = k.reshape(B, S, N_HEAD, D_HEAD).transpose(0, 2, 1, 3)
    vh = v.reshape(B, S, N_HEAD, D_HEAD).transpose(0, 2, 1, 3)
    s = jnp.einsum("bhqd,bhkd->bhqk", qh, kh) / math.sqrt(D_HEAD)
    p = jax.nn.softmax(s, axis=-1)
    o = jnp.einsum("bhqk,bhkd->bhqd", p, vh)
    o = o.transpose(0, 2, 1, 3).reshape(B, S, D)
    attn = o @ wo + bo
    x1 = ln(attn + x, g1, beta1)
    h = jnp.maximum(x1 @ w1 + b1, 0.0)
    y = h @ w2 + b2
    return ln(y + x1, g2, beta2)


def make_params(key):
    ks = jax.random.split(key, 16)

    def lin_w(k, fan_in, fan_out):
        return jax.random.normal(k, (fan_in, fan_out), jnp.float32) / math.sqrt(fan_in)

    def small_vec(k, n):
        return jax.random.normal(k, (1, n), jnp.float32) * 0.1

    wq = lin_w(ks[0], D_MODEL, D_MODEL); bq = small_vec(ks[1], D_MODEL)
    wk = lin_w(ks[2], D_MODEL, D_MODEL); bk = small_vec(ks[3], D_MODEL)
    wv = lin_w(ks[4], D_MODEL, D_MODEL); bv = small_vec(ks[5], D_MODEL)
    wo = lin_w(ks[6], D_MODEL, D_MODEL); bo = small_vec(ks[7], D_MODEL)
    g1 = 1.0 + small_vec(ks[8], D_MODEL); beta1 = small_vec(ks[9], D_MODEL)
    w1 = lin_w(ks[10], D_MODEL, FFN_HIDDEN); b1 = small_vec(ks[11], FFN_HIDDEN)
    w2 = lin_w(ks[12], FFN_HIDDEN, D_MODEL); b2 = small_vec(ks[13], D_MODEL)
    g2 = 1.0 + small_vec(ks[14], D_MODEL); beta2 = small_vec(ks[15], D_MODEL)
    return (wq, bq, wk, bk, wv, bv, wo, bo,
            g1, beta1, w1, b1, w2, b2, g2, beta2)


if __name__ == "__main__":
    key = jax.random.PRNGKey(0)
    kx, kp = jax.random.split(key)
    x = jax.random.normal(kx, (BATCH, SEQ, D_MODEL), jnp.float32)
    params = make_params(kp)
    packed = pack_params(params)        # packed once, reused across forwards

    out = encoder_layer(x, packed)
    out = jax.block_until_ready(out)

    ref = encoder_layer_ref(x, params)
    assert out.shape == (BATCH, SEQ, D_MODEL)
    err = float(jnp.max(jnp.abs(out - ref)))
    assert jnp.allclose(out, ref, atol=1e-4, rtol=1e-4), err
    print("KERNEL_OK")
</pallas_src>

<mosaic_0001>
module attributes {stable_mosaic.version = 11 : i64} {
  func.func @encoder_layer_kernel(%arg0: memref<16x32xf32, #tpu.memory_space<vmem>>, %arg1: memref<32x96xf32, #tpu.memory_space<vmem>>, %arg2: memref<1x96xf32, #tpu.memory_space<vmem>>, %arg3: memref<64x64xf32, #tpu.memory_space<vmem>>, %arg4: memref<32x32xf32, #tpu.memory_space<vmem>>, %arg5: memref<32x64xf32, #tpu.memory_space<vmem>>, %arg6: memref<1x64xf32, #tpu.memory_space<vmem>>, %arg7: memref<64x32xf32, #tpu.memory_space<vmem>>, %arg8: memref<6x32xf32, #tpu.memory_space<vmem>>, %arg9: memref<16x32xf32, #tpu.memory_space<vmem>>) attributes {dimension_semantics = [], scalar_prefetch = 0 : i64, scratch_operands = 0 : i64, tpu.core_type = #tpu.core_type<tc>} {
    %c0 = arith.constant 0 : index
    %c0_0 = arith.constant 0 : index
    %0 = vector.load %arg0[%c0, %c0_0] : memref<16x32xf32, #tpu.memory_space<vmem>>, vector<16x32xf32>
    %c0_1 = arith.constant 0 : index
    %c0_2 = arith.constant 0 : index
    %1 = vector.load %arg8[%c0_1, %c0_2] : memref<6x32xf32, #tpu.memory_space<vmem>>, vector<6x32xf32>
    %2 = vector.extract_strided_slice %1 {offsets = [0, 0], sizes = [1, 32], strides = [1, 1]} : vector<6x32xf32> to vector<1x32xf32>
    %3 = vector.extract_strided_slice %1 {offsets = [1, 0], sizes = [1, 32], strides = [1, 1]} : vector<6x32xf32> to vector<1x32xf32>
    %4 = vector.extract_strided_slice %1 {offsets = [2, 0], sizes = [1, 32], strides = [1, 1]} : vector<6x32xf32> to vector<1x32xf32>
    %5 = vector.extract_strided_slice %1 {offsets = [3, 0], sizes = [1, 32], strides = [1, 1]} : vector<6x32xf32> to vector<1x32xf32>
    %6 = vector.extract_strided_slice %1 {offsets = [4, 0], sizes = [1, 32], strides = [1, 1]} : vector<6x32xf32> to vector<1x32xf32>
    %7 = vector.extract_strided_slice %1 {offsets = [5, 0], sizes = [1, 32], strides = [1, 1]} : vector<6x32xf32> to vector<1x32xf32>
    %c0_3 = arith.constant 0 : index
    %c0_4 = arith.constant 0 : index
    %8 = vector.load %arg1[%c0_3, %c0_4] : memref<32x96xf32, #tpu.memory_space<vmem>>, vector<32x96xf32>
    %cst = arith.constant dense<0.000000e+00> : vector<16x96xf32>
    %9 = tpu.matmul %0, %8, %cst {dimension_numbers = #tpu.dot_dimension_numbers<[1], [0], [0], [1], [0, 0, 1, 1], [], []>} : vector<16x32xf32>, vector<32x96xf32>, vector<16x96xf32> -> vector<16x96xf32>
    %c0_5 = arith.constant 0 : index
    %c0_6 = arith.constant 0 : index
    %10 = vector.load %arg2[%c0_5, %c0_6] : memref<1x96xf32, #tpu.memory_space<vmem>>, vector<1x96xf32>
    %11 = vector.broadcast %10 : vector<1x96xf32> to vector<16x96xf32>
    %12 = arith.addf %9, %11 : vector<16x96xf32>
    %13 = vector.extract_strided_slice %12 {offsets = [0, 0], sizes = [16, 8], strides = [1, 1]} : vector<16x96xf32> to vector<16x8xf32>
    %14 = vector.extract_strided_slice %12 {offsets = [0, 8], sizes = [16, 8], strides = [1, 1]} : vector<16x96xf32> to vector<16x8xf32>
    %15 = vector.extract_strided_slice %12 {offsets = [0, 16], sizes = [16, 8], strides = [1, 1]} : vector<16x96xf32> to vector<16x8xf32>
    %16 = vector.extract_strided_slice %12 {offsets = [0, 24], sizes = [16, 8], strides = [1, 1]} : vector<16x96xf32> to vector<16x8xf32>
    %17 = tpu.concatenate %13, %14, %15, %16 in 0 : vector<16x8xf32>, vector<16x8xf32>, vector<16x8xf32>, vector<16x8xf32> -> vector<64x8xf32>
    %18 = vector.extract_strided_slice %12 {offsets = [0, 32], sizes = [16, 8], strides = [1, 1]} : vector<16x96xf32> to vector<16x8xf32>
    %19 = vector.extract_strided_slice %12 {offsets = [0, 40], sizes = [16, 8], strides = [1, 1]} : vector<16x96xf32> to vector<16x8xf32>
    %20 = vector.extract_strided_slice %12 {offsets = [0, 48], sizes = [16, 8], strides = [1, 1]} : vector<16x96xf32> to vector<16x8xf32>
    %21 = vector.extract_strided_slice %12 {offsets = [0, 56], sizes = [16, 8], strides = [1, 1]} : vector<16x96xf32> to vector<16x8xf32>
    %22 = tpu.concatenate %18, %19, %20, %21 in 0 : vector<16x8xf32>, vector<16x8xf32>, vector<16x8xf32>, vector<16x8xf32> -> vector<64x8xf32>
    %23 = vector.extract_strided_slice %12 {offsets = [0, 64], sizes = [16, 8], strides = [1, 1]} : vector<16x96xf32> to vector<16x8xf32>
    %24 = vector.extract_strided_slice %12 {offsets = [0, 72], sizes = [16, 8], strides = [1, 1]} : vector<16x96xf32> to vector<16x8xf32>
    %25 = vector.extract_strided_slice %12 {offsets = [0, 80], sizes = [16, 8], strides = [1, 1]} : vector<16x96xf32> to vector<16x8xf32>
    %26 = vector.extract_strided_slice %12 {offsets = [0, 88], sizes = [16, 8], strides = [1, 1]} : vector<16x96xf32> to vector<16x8xf32>
    %27 = tpu.concatenate %23, %24, %25, %26 in 0 : vector<16x8xf32>, vector<16x8xf32>, vector<16x8xf32>, vector<16x8xf32> -> vector<64x8xf32>
    %cst_7 = arith.constant dense<0.000000e+00> : vector<64x64xf32>
    %28 = tpu.matmul %17, %22, %cst_7 {dimension_numbers = #tpu.dot_dimension_numbers<[1], [1], [0], [0], [0, 0, 1, 0], [], []>} : vector<64x8xf32>, vector<64x8xf32>, vector<64x64xf32> -> vector<64x64xf32>
    %c0_8 = arith.constant 0 : index
    %c0_9 = arith.constant 0 : index
    %29 = vector.load %arg3[%c0_8, %c0_9] : memref<64x64xf32, #tpu.memory_space<vmem>>, vector<64x64xf32>
    %30 = arith.addf %28, %29 : vector<64x64xf32>
    %cst_10 = arith.constant dense<0xFF800000> : vector<64xf32>
    %31 = vector.multi_reduction <maximumf>, %30, %cst_10 [1] : vector<64x64xf32> to vector<64xf32>
    %32 = vector.shape_cast %31 : vector<64xf32> to vector<64x1xf32>
    %33 = vector.broadcast %32 : vector<64x1xf32> to vector<64x64xf32>
    %34 = arith.subf %30, %33 : vector<64x64xf32>
    %35 = math.exp %34 : vector<64x64xf32>
    %cst_11 = arith.constant dense<0.000000e+00> : vector<64xf32>
    %36 = vector.multi_reduction <add>, %35, %cst_11 [1] : vector<64x64xf32> to vector<64xf32>
    %37 = vector.shape_cast %36 : vector<64xf32> to vector<64x1xf32>
    %38 = vector.broadcast %37 : vector<64x1xf32> to vector<64x64xf32>
    %39 = arith.divf %35, %38 : vector<64x64xf32>
    %cst_12 = arith.constant dense<0.000000e+00> : vector<64x8xf32>
    %40 = tpu.matmul %39, %27, %cst_12 {dimension_numbers = #tpu.dot_dimension_numbers<[1], [0], [0], [1], [0, 0, 1, 1], [], []>} : vector<64x64xf32>, vector<64x8xf32>, vector<64x8xf32> -> vector<64x8xf32>
    %41 = vector.extract_strided_slice %40 {offsets = [0, 0], sizes = [16, 8], strides = [1, 1]} : vector<64x8xf32> to vector<16x8xf32>
    %42 = vector.extract_strided_slice %40 {offsets = [16, 0], sizes = [16, 8], strides = [1, 1]} : vector<64x8xf32> to vector<16x8xf32>
    %43 = vector.extract_strided_slice %40 {offsets = [32, 0], sizes = [16, 8], strides = [1, 1]} : vector<64x8xf32> to vector<16x8xf32>
    %44 = vector.extract_strided_slice %40 {offsets = [48, 0], sizes = [16, 8], strides = [1, 1]} : vector<64x8xf32> to vector<16x8xf32>
    %45 = tpu.concatenate %41, %42, %43, %44 in 1 : vector<16x8xf32>, vector<16x8xf32>, vector<16x8xf32>, vector<16x8xf32> -> vector<16x32xf32>
    %c0_13 = arith.constant 0 : index
    %c0_14 = arith.constant 0 : index
    %46 = vector.load %arg4[%c0_13, %c0_14] : memref<32x32xf32, #tpu.memory_space<vmem>>, vector<32x32xf32>
    %cst_15 = arith.constant dense<0.000000e+00> : vector<16x32xf32>
    %47 = tpu.matmul %45, %46, %cst_15 {dimension_numbers = #tpu.dot_dimension_numbers<[1], [0], [0], [1], [0, 0, 1, 1], [], []>} : vector<16x32xf32>, vector<32x32xf32>, vector<16x32xf32> -> vector<16x32xf32>
    %48 = vector.broadcast %2 : vector<1x32xf32> to vector<16x32xf32>
    %49 = arith.addf %47, %48 : vector<16x32xf32>
    %50 = arith.addf %49, %0 : vector<16x32xf32>
    %cst_16 = arith.constant dense<0.000000e+00> : vector<16xf32>
    %51 = vector.multi_reduction <add>, %50, %cst_16 [1] : vector<16x32xf32> to vector<16xf32>
    %52 = vector.shape_cast %51 : vector<16xf32> to vector<16x1xf32>
    %cst_17 = arith.constant 3.200000e+01 : f32
    %53 = vector.broadcast %cst_17 : f32 to vector<16x1xf32>
    %54 = arith.divf %52, %53 : vector<16x1xf32>
    %55 = vector.broadcast %54 : vector<16x1xf32> to vector<16x32xf32>
    %56 = arith.subf %50, %55 : vector<16x32xf32>
    %57 = arith.mulf %56, %56 : vector<16x32xf32>
    %cst_18 = arith.constant dense<0.000000e+00> : vector<16xf32>
    %58 = vector.multi_reduction <add>, %57, %cst_18 [1] : vector<16x32xf32> to vector<16xf32>
    %59 = vector.shape_cast %58 : vector<16xf32> to vector<16x1xf32>
    %cst_19 = arith.constant 3.200000e+01 : f32
    %60 = vector.broadcast %cst_19 : f32 to vector<16x1xf32>
    %61 = arith.divf %59, %60 : vector<16x1xf32>
    %cst_20 = arith.constant 9.99999996E-13 : f32
    %62 = vector.broadcast %cst_20 : f32 to vector<16x1xf32>
    %63 = arith.addf %61, %62 : vector<16x1xf32>
    %64 = math.rsqrt %63 : vector<16x1xf32>
    %65 = vector.broadcast %54 : vector<16x1xf32> to vector<16x32xf32>
    %66 = arith.subf %50, %65 : vector<16x32xf32>
    %67 = vector.broadcast %64 : vector<16x1xf32> to vector<16x32xf32>
    %68 = arith.mulf %66, %67 : vector<16x32xf32>
    %69 = vector.broadcast %3 : vector<1x32xf32> to vector<16x32xf32>
    %70 = arith.mulf %68, %69 : vector<16x32xf32>
    %71 = vector.broadcast %4 : vector<1x32xf32> to vector<16x32xf32>
    %72 = arith.addf %70, %71 : vector<16x32xf32>
    %c0_21 = arith.constant 0 : index
    %c0_22 = arith.constant 0 : index
    %73 = vector.load %arg5[%c0_21, %c0_22] : memref<32x64xf32, #tpu.memory_space<vmem>>, vector<32x64xf32>
    %cst_23 = arith.constant dense<0.000000e+00> : vector<16x64xf32>
    %74 = tpu.matmul %72, %73, %cst_23 {dimension_numbers = #tpu.dot_dimension_numbers<[1], [0], [0], [1], [0, 0, 1, 1], [], []>} : vector<16x32xf32>, vector<32x64xf32>, vector<16x64xf32> -> vector<16x64xf32>
    %c0_24 = arith.constant 0 : index
    %c0_25 = arith.constant 0 : index
    %75 = vector.load %arg6[%c0_24, %c0_25] : memref<1x64xf32, #tpu.memory_space<vmem>>, vector<1x64xf32>
    %76 = vector.broadcast %75 : vector<1x64xf32> to vector<16x64xf32>
    %77 = arith.addf %74, %76 : vector<16x64xf32>
    %cst_26 = arith.constant 0.000000e+00 : f32
    %78 = vector.broadcast %cst_26 : f32 to vector<16x64xf32>
    %79 = arith.maximumf %77, %78 : vector<16x64xf32>
    %c0_27 = arith.constant 0 : index
    %c0_28 = arith.constant 0 : index
    %80 = vector.load %arg7[%c0_27, %c0_28] : memref<64x32xf32, #tpu.memory_space<vmem>>, vector<64x32xf32>
    %cst_29 = arith.constant dense<0.000000e+00> : vector<16x32xf32>
    %81 = tpu.matmul %79, %80, %cst_29 {dimension_numbers = #tpu.dot_dimension_numbers<[1], [0], [0], [1], [0, 0, 1, 1], [], []>} : vector<16x64xf32>, vector<64x32xf32>, vector<16x32xf32> -> vector<16x32xf32>
    %82 = vector.broadcast %5 : vector<1x32xf32> to vector<16x32xf32>
    %83 = arith.addf %81, %82 : vector<16x32xf32>
    %84 = arith.addf %83, %72 : vector<16x32xf32>
    %cst_30 = arith.constant dense<0.000000e+00> : vector<16xf32>
    %85 = vector.multi_reduction <add>, %84, %cst_30 [1] : vector<16x32xf32> to vector<16xf32>
    %86 = vector.shape_cast %85 : vector<16xf32> to vector<16x1xf32>
    %cst_31 = arith.constant 3.200000e+01 : f32
    %87 = vector.broadcast %cst_31 : f32 to vector<16x1xf32>
    %88 = arith.divf %86, %87 : vector<16x1xf32>
    %89 = vector.broadcast %88 : vector<16x1xf32> to vector<16x32xf32>
    %90 = arith.subf %84, %89 : vector<16x32xf32>
    %91 = arith.mulf %90, %90 : vector<16x32xf32>
    %cst_32 = arith.constant dense<0.000000e+00> : vector<16xf32>
    %92 = vector.multi_reduction <add>, %91, %cst_32 [1] : vector<16x32xf32> to vector<16xf32>
    %93 = vector.shape_cast %92 : vector<16xf32> to vector<16x1xf32>
    %cst_33 = arith.constant 3.200000e+01 : f32
    %94 = vector.broadcast %cst_33 : f32 to vector<16x1xf32>
    %95 = arith.divf %93, %94 : vector<16x1xf32>
    %cst_34 = arith.constant 9.99999996E-13 : f32
    %96 = vector.broadcast %cst_34 : f32 to vector<16x1xf32>
    %97 = arith.addf %95, %96 : vector<16x1xf32>
    %98 = math.rsqrt %97 : vector<16x1xf32>
    %99 = vector.broadcast %88 : vector<16x1xf32> to vector<16x32xf32>
    %100 = arith.subf %84, %99 : vector<16x32xf32>
    %101 = vector.broadcast %98 : vector<16x1xf32> to vector<16x32xf32>
    %102 = arith.mulf %100, %101 : vector<16x32xf32>
    %103 = vector.broadcast %6 : vector<1x32xf32> to vector<16x32xf32>
    %104 = arith.mulf %102, %103 : vector<16x32xf32>
    %105 = vector.broadcast %7 : vector<1x32xf32> to vector<16x32xf32>
    %106 = arith.addf %104, %105 : vector<16x32xf32>
    %c0_35 = arith.constant 0 : index
    %c0_36 = arith.constant 0 : index
    %107 = vector.load %arg9[%c0_35, %c0_36] : memref<16x32xf32, #tpu.memory_space<vmem>>, vector<16x32xf32>
    tpu.vector_store %arg9[%c0_35, %c0_36], %106 {strides = array<i32>} : memref<16x32xf32, #tpu.memory_space<vmem>>, vector<16x32xf32>,
    return
  }
}

</mosaic_0001>

<llo_original>
// kernel: encoder_layer.1
$region0: #{encoder_layer.1}
  #allocation0 [shape = 'u32[]', space=smem, size = 0x4, offset = 0x4, fixed_abs, tag = 'smem constant byte address 0x4 - core index']
  #allocation1 [shape = 'u32[144,128]{1,0:T(1,128)}', space=vmem, size = 0x12000, scoped, tag = 'internal scratch']
  %s0 = inlined_call_operand.hbm [shape: f32[16,32], index: 0, kind: input, shape index: {}]
  %s1 = inlined_call_operand.vmem [shape: f32[32,96], index: 1, kind: input, shape index: {}]
  %s2 = inlined_call_operand.vmem [shape: f32[1,96], index: 2, kind: input, shape index: {}]
  %s3 = inlined_call_operand.vmem [shape: f32[64,64], index: 3, kind: input, shape index: {}]
  %s4 = inlined_call_operand.hbm [shape: f32[32,32], index: 4, kind: input, shape index: {}]
  %s5 = inlined_call_operand.hbm [shape: f32[32,64], index: 5, kind: input, shape index: {}]
  %s6 = inlined_call_operand.vmem [shape: f32[1,64], index: 6, kind: input, shape index: {}]
  %s7 = inlined_call_operand.vmem [shape: f32[64,32], index: 7, kind: input, shape index: {}]
  %s8 = inlined_call_operand.vmem [shape: f32[6,32], index: 8, kind: input, shape index: {}]
  %s9 = inlined_call_operand.hbm [shape: f32[16,32], index: 9, kind: output, shape index: {}]
  %s10 = sld [smem:[#allocation0]]
  $region58: #{encoder_layer.1} parent=0
    _
  %s12 = ssub.s32 1, %s10
  %s13 = scalar_select 0, %s12, %s10
  $region1: #{encoder_layer.1} parent=0
    #allocation2 [shape = 'u8[8192]{0}', space=vmem, size = 0x2000, scoped, tag = 'input window, operand 0, single buffered']
    #allocation3 [shape = 's32[1]{0}', space=sflag, size = 0x4, scoped, tag = 'scoped memory for encoder_layer.1']
    #allocation4 [shape = 's32[1]{0}', space=sflag, size = 0x4, scoped, tag = 'scoped memory for encoder_layer.1']
    #allocation5 [shape = 'u8[16384]{0}', space=vmem, size = 0x4000, scoped, tag = 'input window, operand 4, single buffered']
    #allocation6 [shape = 's32[1]{0}', space=sflag, size = 0x4, scoped, tag = 'scoped memory for encoder_layer.1']
    #allocation7 [shape = 'u8[16384]{0}', space=vmem, size = 0x4000, scoped, tag = 'input window, operand 5, single buffered']
    #allocation8 [shape = 'u8[8192]{0}', space=vmem, size = 0x2000, scoped, tag = 'output window, operand 0, single buffered']
    %14 = vsyncpa [#allocation3], 0
    %15 = vsyncpa [#allocation6], 0
    %16 = vsyncpa [#allocation4], 0
    // Predicated region
    $region2: #{encoder_layer.1} parent=1 // pred_check
      _
    $region3: #{encoder_layer.1} parent=1 // pred_check_branch
      %18 = sbr.rel (0) target = $region5
    $region4: #{encoder_layer.1} parent=1 // pred_region
      %s20 = ssub.s32 256, 256
      %21 = vsyncadd [#allocation3], %s20
      %s22 = sshll.u32 [#allocation2], 4
      %s23 = int_to_ptr.vmem [resolvable:$true] %s22
      %28 = dma.hbm_to_vmem [thread:$0]  %s0, 256, %s23, [#allocation3], 128, 128, 8
    $region5: #{encoder_layer.1} parent=1 // pred_fallthru
      _
    // Predicated region
    $region6: #{encoder_layer.1} parent=1 // pred_check
      _
    $region7: #{encoder_layer.1} parent=1 // pred_check_branch
      %30 = sbr.rel (0) target = $region9
    $region8: #{encoder_layer.1} parent=1 // pred_region
      _
    $region9: #{encoder_layer.1} parent=1 // pred_fallthru
      _
    // Predicated region
    $region10: #{encoder_layer.1} parent=1 // pred_check
      _
    $region11: #{encoder_layer.1} parent=1 // pred_check_branch
      %32 = sbr.rel (0) target = $region13
    $region12: #{encoder_layer.1} parent=1 // pred_region
      _
    $region13: #{encoder_layer.1} parent=1 // pred_fallthru
      _
    // Predicated region
    $region14: #{encoder_layer.1} parent=1 // pred_check
      _
    $region15: #{encoder_layer.1} parent=1 // pred_check_branch
      %34 = sbr.rel (0) target = $region17
    $region16: #{encoder_layer.1} parent=1 // pred_region
      _
    $region17: #{encoder_layer.1} parent=1 // pred_fallthru
      _
    // Predicated region
    $region18: #{encoder_layer.1} parent=1 // pred_check
      _
    $region19: #{encoder_layer.1} parent=1 // pred_check_branch
      %36 = sbr.rel (0) target = $region21
    $region20: #{encoder_layer.1} parent=1 // pred_region
      %s38 = ssub.s32 512, 512
      %39 = vsyncadd [#allocation6], %s38
      %s40 = sshll.u32 [#allocation5], 4
      %s41 = int_to_ptr.vmem [resolvable:$true] %s40
      %46 = dma.hbm_to_vmem [thread:$0]  %s4, 512, %s41, [#allocation6], 128, 128, 8
    $region21: #{encoder_layer.1} parent=1 // pred_fallthru
      _
    // Predicated region
    $region22: #{encoder_layer.1} parent=1 // pred_check
      _
    $region23: #{encoder_layer.1} parent=1 // pred_check_branch
      %48 = sbr.rel (0) target = $region25
    $region24: #{encoder_layer.1} parent=1 // pred_region
      %s50 = ssub.s32 512, 512
      %51 = vsyncadd [#allocation6], %s50
      %s52 = sshll.u32 [#allocation7], 4
      %s53 = int_to_ptr.vmem [resolvable:$true] %s52
      %58 = dma.hbm_to_vmem [thread:$0]  %s5, 512, %s53, [#allocation6], 128, 128, 8
    $region25: #{encoder_layer.1} parent=1 // pred_fallthru
      _
    // Predicated region
    $region26: #{encoder_layer.1} parent=1 // pred_check
      _
    $region27: #{encoder_layer.1} parent=1 // pred_check_branch
      %60 = sbr.rel (0) target = $region29
    $region28: #{encoder_layer.1} parent=1 // pred_region
      _
    $region29: #{encoder_layer.1} parent=1 // pred_fallthru
      _
    // Predicated region
    $region30: #{encoder_layer.1} parent=1 // pred_check
      _
    $region31: #{encoder_layer.1} parent=1 // pred_check_branch
      %62 = sbr.rel (0) target = $region33
    $region32: #{encoder_layer.1} parent=1 // pred_region
      _
    $region33: #{encoder_layer.1} parent=1 // pred_fallthru
      _
    // Predicated region
    $region34: #{encoder_layer.1} parent=1 // pred_check
      _
    $region35: #{encoder_layer.1} parent=1 // pred_check_branch
      %64 = sbr.rel (0) target = $region37
    $region36: #{encoder_layer.1} parent=1 // pred_region
      _
    $region37: #{encoder_layer.1} parent=1 // pred_fallthru
      _
    // Predicated region
    $region38: #{encoder_layer.1} parent=1 // pred_check
      _
    $region39: #{encoder_layer.1} parent=1 // pred_check_branch
      %66 = sbr.rel (0) target = $region41
    $region40: #{encoder_layer.1} parent=1 // pred_region
      %67 = dma.done [#allocation3], 256
    $region41: #{encoder_layer.1} parent=1 // pred_fallthru
      _
    // Predicated region
    $region42: #{encoder_layer.1} parent=1 // pred_check
      _
    $region43: #{encoder_layer.1} parent=1 // pred_check_branch
      %69 = sbr.rel (0) target = $region45
    $region44: #{encoder_layer.1} parent=1 // pred_region
      %70 = dma.done [#allocation6], 512
    $region45: #{encoder_layer.1} parent=1 // pred_fallthru
      _
    // Predicated region
    $region46: #{encoder_layer.1} parent=1 // pred_check
      _
    $region47: #{encoder_layer.1} parent=1 // pred_check_branch
      %72 = sbr.rel (0) target = $region49
    $region48: #{encoder_layer.1} parent=1 // pred_region
      %73 = dma.done [#allocation6], 512
    $region49: #{encoder_layer.1} parent=1 // pred_fallthru
      _
    %v74 = vld [vmem:[#allocation2] sm:$0xff]
    %v75 = vld [vmem:[#allocation2 + $0x8] sm:$0xff]
    %v76 = vld [vmem:[%s8] sm:$0x3f]
    %v77 = vld [vmem:[%s1] sm:$0xff]
    %v78 = vld [vmem:[%s1 + $0x8] sm:$0xff]
    %v79 = vld [vmem:[%s1 + $0x10] sm:$0xff]
    %v80 = vld [vmem:[%s1 + $0x18] sm:$0xff]
    %v81 = vld [vmem:[%s2] sm:$0x1]
    %v83 = vlaneseq
    %v84 = vshrl.u32 %v83, 7
    %v85 = vsub.s32 0, %v84
    %v86 = vrot.slane %v81, %v85
    %vm88 = vcmask 261120
    %v90 = vsel %vm88, %v74, 0
    %v93 = vsel %vm88, %v75, 0
    %95 = vmatprep.subr.mxu0 0.0
    %96 = vmatpush1.msra.mxu0 %v77
    %97 = vmatprep.subr.mxu0 0.0
    %98 = vmatpush1.msra.mxu0 %v78
    %99 = vmatprep.subr.mxu0 0.0
    %100 = vmatpush1.msra.mxu0 %v79
    %101 = vmatprep.subr.mxu0 0.0
    %102 = vmatpush1.msra.mxu0 %v80
    %103 = vmatprep.subr.mxu0 0.0
    %104 = vmatpush1.msra.mxu0 0.0
    %105 = vmatprep.subr.mxu0 0.0
    %106 = vmatpush1.msra.mxu0 0.0
    %107 = vmatprep.subr.mxu0 0.0
    %108 = vmatpush1.msra.mxu0 0.0
    %109 = vmatprep.subr.mxu0 0.0
    %110 = vmatpush1.msra.mxu0 0.0
    %111 = vmatprep.subr.mxu0 0.0
    %112 = vmatpush1.msra.mxu0 0.0
    %113 = vmatprep.subr.mxu0 0.0
    %114 = vmatpush1.msra.mxu0 0.0
    %115 = vmatprep.subr.mxu0 0.0
    %116 = vmatpush1.msra.mxu0 0.0
    %117 = vmatprep.subr.mxu0 0.0
    %118 = vmatpush1.msra.mxu0 0.0
    %119 = vmatprep.subr.mxu0 0.0
    %120 = vmatpush1.msra.mxu0 0.0
    %121 = vmatprep.subr.mxu0 0.0
    %122 = vmatpush1.msra.mxu0 0.0
    %123 = vmatprep.subr.mxu0 0.0
    %124 = vmatpush1.msra.mxu0 0.0
    %125 = vmatprep.subr.mxu0 0.0
    %126 = vmatpush1.msra.mxu0 0.0
    %127 = vmatprep.subr.mxu0 0.0
    %128 = vmatpush1.msra.mxu0 0.0
    %129 = vmatprep.subr.mxu0 0.0
    %130 = vmatpush1.msra.mxu0 0.0
    %131 = vmatprep.subr.mxu0 0.0
    %132 = vmatpush1.msra.mxu0 0.0
    %133 = vmatprep.subr.mxu0 0.0
    %134 = vmatpush1.msra.mxu0 0.0
    %135 = vmatprep.subr.mxu0 0.0
    %136 = vmatpush1.msra.mxu0 0.0
    %137 = vmatprep.subr.mxu0 0.0
    %138 = vmatpush1.msra.mxu0 0.0
    %139 = vmatprep.subr.mxu0 0.0
    %140 = vmatpush1.msra.mxu0 0.0
    %141 = vmatprep.subr.mxu0 0.0
    %142 = vmatpush1.msra.mxu0 0.0
    %143 = vmatprep.subr.mxu0 0.0
    %144 = vmatpush1.msra.mxu0 0.0
    %145 = vmatprep.subr.mxu0 0.0
    %146 = vmatpush1.msra.mxu0 0.0
    %147 = vmatprep.subr.mxu0 0.0
    %148 = vmatpush1.msra.mxu0 0.0
    %149 = vmatprep.subr.mxu0 0.0
    %150 = vmatpush1.msra.mxu0 0.0
    %151 = vmatprep.subr.mxu0 0.0
    %152 = vmatpush1.msra.mxu0 0.0
    %153 = vmatprep.subr.mxu0 0.0
    %154 = vmatpush1.msra.mxu0 0.0
    %155 = vmatprep.subr.mxu0 0.0
    %156 = vmatpush1.msra.mxu0 0.0
    %157 = vmatprep.subr.mxu0 0.0
    %158 = vmatpush1.msra.mxu0 0.0
    %159 = vmatprep.mubr.f32.mxu0 0.0
    %160 = vmatmul.mubr.f32.gmra.mrb[0].mxu0 %v90
    %v161 = vpop.f32.mrb[0].mxu0
    %v162 = vadd.f32 %v86, %v161
    %v163 = vpop.f32.mrb[0].mxu0
    %164 = vmatprep.mubr.f32.mxu0 0.0
    %165 = vmatmul.mubr.f32.gmra.mrb[0].mxu0 %v93
    %v166 = vpop.f32.mrb[0].mxu0
    %v167 = vadd.f32 %v86, %v166
    %v168 = vpop.f32.mrb[0].mxu0
    %169 = vdwg.mxu0
    %172 = vrot.lane.b32.xlu0 %v162, 120
    %v173 = vpop.permute.xlu0 %172
    %174 = vrot.lane.b32.xlu0 %v167, 120
    %v175 = vpop.permute.xlu0 %174
    %176 = vrot.lane.b32.xlu0 %v162, 112
    %v177 = vpop.permute.xlu0 %176
    %178 = vrot.lane.b32.xlu0 %v167, 112
    %v179 = vpop.permute.xlu0 %178
    %180 = vrot.lane.b32.xlu0 %v162, 104
    %v181 = vpop.permute.xlu0 %180
    %182 = vrot.lane.b32.xlu0 %v167, 104
    %v183 = vpop.permute.xlu0 %182
    %v184 = vld [vmem:[%s3] sm:$0xff]
    %v185 = vld [vmem:[%s3 + $0x8] sm:$0xff]
    %v186 = vld [vmem:[%s3 + $0x10] sm:$0xff]
    %v187 = vld [vmem:[%s3 + $0x18] sm:$0xff]
    %v188 = vld [vmem:[%s3 + $0x20] sm:$0xff]
    %v189 = vld [vmem:[%s3 + $0x28] sm:$0xff]
    %v190 = vld [vmem:[%s3 + $0x30] sm:$0xff]
    %v191 = vld [vmem:[%s3 + $0x38] sm:$0xff]
    %192 = vrot.lane.b32.xlu0 %v162, 96
    %v193 = vpop.permute.xlu0 %192
    %194 = vrot.lane.b32.xlu0 %v167, 96
    %v195 = vpop.permute.xlu0 %194
    %196 = vrot.lane.b32.xlu0 %v173, 96
    %v197 = vpop.permute.xlu0 %196
    %198 = vrot.lane.b32.xlu0 %v175, 96
    %v199 = vpop.permute.xlu0 %198
    %200 = vrot.lane.b32.xlu0 %v177, 96
    %v201 = vpop.permute.xlu0 %200
    %202 = vrot.lane.b32.xlu0 %v179, 96
    %v203 = vpop.permute.xlu0 %202
    %204 = vrot.lane.b32.xlu0 %v181, 96
    %v205 = vpop.permute.xlu0 %204
    %206 = vrot.lane.b32.xlu0 %v183, 96
    %v207 = vpop.permute.xlu0 %206
    %vm208 = vcmask 64512
    %v209 = vsel %vm208, %v162, 0
    %v211 = vsel %vm208, %v167, 0
    %v213 = vsel %vm208, %v173, 0
    %v215 = vsel %vm208, %v175, 0
    %v217 = vsel %vm208, %v177, 0
    %v219 = vsel %vm208, %v179, 0
    %v221 = vsel %vm208, %v181, 0
    %v223 = vsel %vm208, %v183, 0
    %v225 = vsel %vm208, %v193, 0
    %v227 = vsel %vm208, %v195, 0
    %v229 = vsel %vm208, %v197, 0
    %v231 = vsel %vm208, %v199, 0
    %v233 = vsel %vm208, %v201, 0
    %v235 = vsel %vm208, %v203, 0
    %v237 = vsel %vm208, %v205, 0
    %v239 = vsel %vm208, %v207, 0
    %241 = vmatprep.subr.mxu0 0.0
    %242 = vmatpush1.xpose.msra.mxu0 %v225
    %243 = vmatprep.subr.mxu0 0.0
    %244 = vmatpush1.xpose.msra.mxu0 %v227
    %245 = vmatprep.subr.mxu0 0.0
    %246 = vmatpush1.xpose.msra.mxu0 %v229
    %247 = vmatprep.subr.mxu0 0.0
    %248 = vmatpush1.xpose.msra.mxu0 %v231
    %249 = vmatprep.subr.mxu0 0.0
    %250 = vmatpush1.xpose.msra.mxu0 %v233
    %251 = vmatprep.subr.mxu0 0.0
    %252 = vmatpush1.xpose.msra.mxu0 %v235
    %253 = vmatprep.subr.mxu0 0.0
    %254 = vmatpush1.xpose.msra.mxu0 %v237
    %255 = vmatprep.subr.mxu0 0.0
    %256 = vmatpush1.xpose.msra.mxu0 %v239
    %257 = vmatprep.subr.mxu0 0.0
    %258 = vmatpush1.xpose.msra.mxu0 0.0
    %259 = vmatprep.subr.mxu0 0.0
    %260 = vmatpush1.xpose.msra.mxu0 0.0
    %261 = vmatprep.subr.mxu0 0.0
    %262 = vmatpush1.xpose.msra.mxu0 0.0
    %263 = vmatprep.subr.mxu0 0.0
    %264 = vmatpush1.xpose.msra.mxu0 0.0
    %265 = vmatprep.subr.mxu0 0.0
    %266 = vmatpush1.xpose.msra.mxu0 0.0
    %267 = vmatprep.subr.mxu0 0.0
    %268 = vmatpush1.xpose.msra.mxu0 0.0
    %269 = vmatprep.subr.mxu0 0.0
    %270 = vmatpush1.xpose.msra.mxu0 0.0
    %271 = vmatprep.subr.mxu0 0.0
    %272 = vmatpush1.xpose.msra.mxu0 0.0
    %273 = vmatprep.subr.mxu0 0.0
    %274 = vmatpush1.xpose.msra.mxu0 0.0
    %275 = vmatprep.subr.mxu0 0.0
    %276 = vmatpush1.xpose.msra.mxu0 0.0
    %277 = vmatprep.subr.mxu0 0.0
    %278 = vmatpush1.xpose.msra.mxu0 0.0
    %279 = vmatprep.subr.mxu0 0.0
    %280 = vmatpush1.xpose.msra.mxu0 0.0
    %281 = vmatprep.subr.mxu0 0.0
    %282 = vmatpush1.xpose.msra.mxu0 0.0
    %283 = vmatprep.subr.mxu0 0.0
    %284 = vmatpush1.xpose.msra.mxu0 0.0
    %285 = vmatprep.subr.mxu0 0.0
    %286 = vmatpush1.xpose.msra.mxu0 0.0
    %287 = vmatprep.subr.mxu0 0.0
    %288 = vmatpush1.xpose.msra.mxu0 0.0
    %289 = vmatprep.subr.mxu0 0.0
    %290 = vmatpush1.xpose.msra.mxu0 0.0
    %291 = vmatprep.subr.mxu0 0.0
    %292 = vmatpush1.xpose.msra.mxu0 0.0
    %293 = vmatprep.subr.mxu0 0.0
    %294 = vmatpush1.xpose.msra.mxu0 0.0
    %295 = vmatprep.subr.mxu0 0.0
    %296 = vmatpush1.xpose.msra.mxu0 0.0
    %297 = vmatprep.subr.mxu0 0.0
    %298 = vmatpush1.xpose.msra.mxu0 0.0
    %299 = vmatprep.subr.mxu0 0.0
    %300 = vmatpush1.xpose.msra.mxu0 0.0
    %301 = vmatprep.subr.mxu0 0.0
    %302 = vmatpush1.xpose.msra.mxu0 0.0
    %303 = vmatprep.subr.mxu0 0.0
    %304 = vmatpush1.xpose.msra.mxu0 0.0
    %305 = vmatprep.mubr.f32.mxu0 0.0
    %306 = vmatmul.mubr.f32.gmra.mrb[0].mxu0 %v209
    %v307 = vpop.f32.mrb[0].mxu0
    %v308 = vadd.f32 %v184, %v307
    %v309 = vpop.f32.mrb[0].mxu0
    %310 = vmatprep.mubr.f32.mxu0 0.0
    %311 = vmatmul.mubr.f32.gmra.mrb[0].mxu0 %v211
    %v312 = vpop.f32.mrb[0].mxu0
    %v313 = vadd.f32 %v185, %v312
    %v314 = vpop.f32.mrb[0].mxu0
    %315 = vmatprep.mubr.f32.mxu0 0.0
    %316 = vmatmul.mubr.f32.gmra.mrb[0].mxu0 %v213
    %v317 = vpop.f32.mrb[0].mxu0
    %v318 = vadd.f32 %v186, %v317
    %v319 = vpop.f32.mrb[0].mxu0
    %320 = vmatprep.mubr.f32.mxu0 0.0
    %321 = vmatmul.mubr.f32.gmra.mrb[0].mxu0 %v215
    %v322 = vpop.f32.mrb[0].mxu0
    %v323 = vadd.f32 %v187, %v322
    %v324 = vpop.f32.mrb[0].mxu0
    %325 = vmatprep.mubr.f32.mxu0 0.0
    %326 = vmatmul.mubr.f32.gmra.mrb[0].mxu0 %v217
    %v327 = vpop.f32.mrb[0].mxu0
    %v328 = vadd.f32 %v188, %v327
    %v329 = vpop.f32.mrb[0].mxu0
    %330 = vmatprep.mubr.f32.mxu0 0.0
    %331 = vmatmul.mubr.f32.gmra.mrb[0].mxu0 %v219
    %v332 = vpop.f32.mrb[0].mxu0
    %v333 = vadd.f32 %v189, %v332
    %v334 = vpop.f32.mrb[0].mxu0
    %335 = vmatprep.mubr.f32.mxu0 0.0
    %336 = vmatmul.mubr.f32.gmra.mrb[0].mxu0 %v221
    %v337 = vpop.f32.mrb[0].mxu0
    %v338 = vadd.f32 %v190, %v337
    %v339 = vpop.f32.mrb[0].mxu0
    %340 = vmatprep.mubr.f32.mxu0 0.0
    %341 = vmatmul.mubr.f32.gmra.mrb[0].mxu0 %v223
    %v342 = vpop.f32.mrb[0].mxu0
    %v343 = vadd.f32 %v191, %v342
    %v344 = vpop.f32.mrb[0].mxu0
    %345 = vdwg.mxu0
    %vm346 = vcmask 523264
    %v347 = vsel %vm346, %v308, -inf
    %348 = vmax.xlane.f32.xlu0 %v347
    %v349 = vpop.xlane.xlu0 %348
    %v350 = vsel %vm346, %v313, -inf
    %351 = vmax.xlane.f32.xlu0 %v350
    %v352 = vpop.xlane.xlu0 %351
    %v353 = vsel %vm346, %v318, -inf
    %354 = vmax.xlane.f32.xlu0 %v353
    %v355 = vpop.xlane.xlu0 %354
    %v356 = vsel %vm346, %v323, -inf
    %357 = vmax.xlane.f32.xlu0 %v356
    %v358 = vpop.xlane.xlu0 %357
    %v359 = vsel %vm346, %v328, -inf
    %360 = vmax.xlane.f32.xlu0 %v359
    %v361 = vpop.xlane.xlu0 %360
    %v362 = vsel %vm346, %v333, -inf
    %363 = vmax.xlane.f32.xlu0 %v362
    %v364 = vpop.xlane.xlu0 %363
    %v365 = vsel %vm346, %v338, -inf
    %366 = vmax.xlane.f32.xlu0 %v365
    %v367 = vpop.xlane.xlu0 %366
    %v368 = vsel %vm346, %v343, -inf
    %369 = vmax.xlane.f32.xlu0 %v368
    %v370 = vpop.xlane.xlu0 %369
    %v371 = vsub.f32 %v308, %v349
    %v372 = vsub.f32 %v313, %v352
    %v373 = vsub.f32 %v318, %v355
    %v374 = vsub.f32 %v323, %v358
    %v375 = vsub.f32 %v328, %v361
    %v376 = vsub.f32 %v333, %v364
    %v377 = vsub.f32 %v338, %v367
    %v378 = vsub.f32 %v343, %v370
    %v379 = vmul.f32 %v371, 1.442695
    %v380 = vpow.pop %v379
    %v381 = vmul.f32 %v372, 1.442695
    %v382 = vpow.pop %v381
    %v383 = vmul.f32 %v373, 1.442695
    %v384 = vpow.pop %v383
    %v385 = vmul.f32 %v374, 1.442695
    %v386 = vpow.pop %v385
    %v387 = vmul.f32 %v375, 1.442695
    %v388 = vpow.pop %v387
    %v389 = vmul.f32 %v376, 1.442695
    %v390 = vpow.pop %v389
    %v391 = vmul.f32 %v377, 1.442695
    %v392 = vpow.pop %v391
    %v393 = vmul.f32 %v378, 1.442695
    %v394 = vpow.pop %v393
    %v395 = vsel %vm346, %v380, 0.0
    %396 = vadd.xlane.f32.xlu0 %v395
    %v397 = vpop.xlane.xlu0 %396
    %v398 = vsel %vm346, %v382, 0.0
    %399 = vadd.xlane.f32.xlu0 %v398
    %v400 = vpop.xlane.xlu0 %399
    %v401 = vsel %vm346, %v384, 0.0
    %402 = vadd.xlane.f32.xlu0 %v401
    %v403 = vpop.xlane.xlu0 %402
    %v404 = vsel %vm346, %v386, 0.0
    %405 = vadd.xlane.f32.xlu0 %v404
    %v406 = vpop.xlane.xlu0 %405
    %v407 = vsel %vm346, %v388, 0.0
    %408 = vadd.xlane.f32.xlu0 %v407
    %v409 = vpop.xlane.xlu0 %408
    %v410 = vsel %vm346, %v390, 0.0
    %411 = vadd.xlane.f32.xlu0 %v410
    %v412 = vpop.xlane.xlu0 %411
    %v413 = vsel %vm346, %v392, 0.0
    %414 = vadd.xlane.f32.xlu0 %v413
    %v415 = vpop.xlane.xlu0 %414
    %v416 = vsel %vm346, %v394, 0.0
    %417 = vadd.xlane.f32.xlu0 %v416
    %v418 = vpop.xlane.xlu0 %417
    %v419 = vrcp.pop %v397
    %v420 = vmul.f32 %v380, %v419
    %v421 = vrcp.pop %v400
    %v422 = vmul.f32 %v382, %v421
    %v423 = vrcp.pop %v403
    %v424 = vmul.f32 %v384, %v423
    %v425 = vrcp.pop %v406
    %v426 = vmul.f32 %v386, %v425
    %v427 = vrcp.pop %v409
    %v428 = vmul.f32 %v388, %v427
    %v429 = vrcp.pop %v412
    %v430 = vmul.f32 %v390, %v429
    %v431 = vrcp.pop %v415
    %v432 = vmul.f32 %v392, %v431
    %v433 = vrcp.pop %v418
    %v434 = vmul.f32 %v394, %v433
    %435 = vrot.lane.b32.xlu0 %v162, 64
    %v436 = vpop.permute.xlu0 %435
    %437 = vrot.lane.b32.xlu0 %v167, 64
    %v438 = vpop.permute.xlu0 %437
    %439 = vrot.lane.b32.xlu0 %v173, 64
    %v440 = vpop.permute.xlu0 %439
    %441 = vrot.lane.b32.xlu0 %v175, 64
    %v442 = vpop.permute.xlu0 %441
    %443 = vrot.lane.b32.xlu0 %v177, 64
    %v444 = vpop.permute.xlu0 %443
    %445 = vrot.lane.b32.xlu0 %v179, 64
    %v446 = vpop.permute.xlu0 %445
    %447 = vrot.lane.b32.xlu0 %v181, 64
    %v448 = vpop.permute.xlu0 %447
    %449 = vrot.lane.b32.xlu0 %v183, 64
    %v450 = vpop.permute.xlu0 %449
    %v460 = vsel %vm346, %v420, 0
    %v463 = vsel %vm346, %v422, 0
    %v466 = vsel %vm346, %v424, 0
    %v469 = vsel %vm346, %v426, 0
    %v472 = vsel %vm346, %v428, 0
    %v475 = vsel %vm346, %v430, 0
    %v478 = vsel %vm346, %v432, 0
    %v481 = vsel %vm346, %v434, 0
    %483 = vmatprep.subr.mxu0 0.0
    %484 = vmatpush1.msra.mxu0 %v436
    %485 = vmatprep.subr.mxu0 0.0
    %486 = vmatpush1.msra.mxu0 %v438
    %487 = vmatprep.subr.mxu0 0.0
    %488 = vmatpush1.msra.mxu0 %v440
    %489 = vmatprep.subr.mxu0 0.0
    %490 = vmatpush1.msra.mxu0 %v442
    %491 = vmatprep.subr.mxu0 0.0
    %492 = vmatpush1.msra.mxu0 %v444
    %493 = vmatprep.subr.mxu0 0.0
    %494 = vmatpush1.msra.mxu0 %v446
    %495 = vmatprep.subr.mxu0 0.0
    %496 = vmatpush1.msra.mxu0 %v448
    %497 = vmatprep.subr.mxu0 0.0
    %498 = vmatpush1.msra.mxu0 %v450
    %499 = vmatprep.subr.mxu0 0.0
    %500 = vmatpush1.msra.mxu0 0.0
    %501 = vmatprep.subr.mxu0 0.0
    %502 = vmatpush1.msra.mxu0 0.0
    %503 = vmatprep.subr.mxu0 0.0
    %504 = vmatpush1.msra.mxu0 0.0
    %505 = vmatprep.subr.mxu0 0.0
    %506 = vmatpush1.msra.mxu0 0.0
    %507 = vmatprep.subr.mxu0 0.0
    %508 = vmatpush1.msra.mxu0 0.0
    %509 = vmatprep.subr.mxu0 0.0
    %510 = vmatpush1.msra.mxu0 0.0
    %511 = vmatprep.subr.mxu0 0.0
    %512 = vmatpush1.msra.mxu0 0.0
    %513 = vmatprep.subr.mxu0 0.0
    %514 = vmatpush1.msra.mxu0 0.0
    %515 = vmatprep.subr.mxu0 0.0
    %516 = vmatpush1.msra.mxu0 0.0
    %517 = vmatprep.subr.mxu0 0.0
    %518 = vmatpush1.msra.mxu0 0.0
    %519 = vmatprep.subr.mxu0 0.0
    %520 = vmatpush1.msra.mxu0 0.0
    %521 = vmatprep.subr.mxu0 0.0
    %522 = vmatpush1.msra.mxu0 0.0
    %523 = vmatprep.subr.mxu0 0.0
    %524 = vmatpush1.msra.mxu0 0.0
    %525 = vmatprep.subr.mxu0 0.0
    %526 = vmatpush1.msra.mxu0 0.0
    %527 = vmatprep.subr.mxu0 0.0
    %528 = vmatpush1.msra.mxu0 0.0
    %529 = vmatprep.subr.mxu0 0.0
    %530 = vmatpush1.msra.mxu0 0.0
    %531 = vmatprep.subr.mxu0 0.0
    %532 = vmatpush1.msra.mxu0 0.0
    %533 = vmatprep.subr.mxu0 0.0
    %534 = vmatpush1.msra.mxu0 0.0
    %535 = vmatprep.subr.mxu0 0.0
    %536 = vmatpush1.msra.mxu0 0.0
    %537 = vmatprep.subr.mxu0 0.0
    %538 = vmatpush1.msra.mxu0 0.0
    %539 = vmatprep.subr.mxu0 0.0
    %540 = vmatpush1.msra.mxu0 0.0
    %541 = vmatprep.subr.mxu0 0.0
    %542 = vmatpush1.msra.mxu0 0.0
    %543 = vmatprep.subr.mxu0 0.0
    %544 = vmatpush1.msra.mxu0 0.0
    %545 = vmatprep.subr.mxu0 0.0
    %546 = vmatpush1.msra.mxu0 0.0
    %547 = vmatprep.mubr.f32.mxu0 0.0
    %548 = vmatmul.mubr.f32.gmra.mrb[0].mxu0 %v460
    %v549 = vpop.f32.mrb[0].mxu0
    %v550 = vadd.f32 0.0, %v549
    %v551 = vpop.f32.mrb[0].mxu0
    %552 = vmatprep.mubr.f32.mxu0 0.0
    %553 = vmatmul.mubr.f32.gmra.mrb[0].mxu0 %v463
    %v554 = vpop.f32.mrb[0].mxu0
    %v555 = vadd.f32 0.0, %v554
    %v556 = vpop.f32.mrb[0].mxu0
    %557 = vmatprep.mubr.f32.mxu0 0.0
    %558 = vmatmul.mubr.f32.gmra.mrb[0].mxu0 %v466
    %v559 = vpop.f32.mrb[0].mxu0
    %v560 = vadd.f32 0.0, %v559
    %v561 = vpop.f32.mrb[0].mxu0
    %562 = vmatprep.mubr.f32.mxu0 0.0
    %563 = vmatmul.mubr.f32.gmra.mrb[0].mxu0 %v469
    %v564 = vpop.f32.mrb[0].mxu0
    %v565 = vadd.f32 0.0, %v564
    %v566 = vpop.f32.mrb[0].mxu0
    %567 = vmatprep.mubr.f32.mxu0 0.0
    %568 = vmatmul.mubr.f32.gmra.mrb[0].mxu0 %v472
    %v569 = vpop.f32.mrb[0].mxu0
    %v570 = vadd.f32 0.0, %v569
    %v571 = vpop.f32.mrb[0].mxu0
    %572 = vmatprep.mubr.f32.mxu0 0.0
    %573 = vmatmul.mubr.f32.gmra.mrb[0].mxu0 %v475
    %v574 = vpop.f32.mrb[0].mxu0
    %v575 = vadd.f32 0.0, %v574
    %v576 = vpop.f32.mrb[0].mxu0
    %577 = vmatprep.mubr.f32.mxu0 0.0
    %578 = vmatmul.mubr.f32.gmra.mrb[0].mxu0 %v478
    %v579 = vpop.f32.mrb[0].mxu0
    %v580 = vadd.f32 0.0, %v579
    %v581 = vpop.f32.mrb[0].mxu0
    %582 = vmatprep.mubr.f32.mxu0 0.0
    %583 = vmatmul.mubr.f32.gmra.mrb[0].mxu0 %v481
    %v584 = vpop.f32.mrb[0].mxu0
    %v585 = vadd.f32 0.0, %v584
    %v586 = vpop.f32.mrb[0].mxu0
    %587 = vdwg.mxu0
    %590 = vrot.lane.b32.xlu0 %v560, 8
    %v591 = vpop.permute.xlu0 %590
    %592 = vrot.lane.b32.xlu0 %v565, 8
    %v593 = vpop.permute.xlu0 %592
    %598 = vrot.lane.b32.xlu0 %v570, 16
    %v599 = vpop.permute.xlu0 %598
    %600 = vrot.lane.b32.xlu0 %v575, 16
    %v601 = vpop.permute.xlu0 %600
    %606 = vrot.lane.b32.xlu0 %v580, 24
    %v607 = vpop.permute.xlu0 %606
    %608 = vrot.lane.b32.xlu0 %v585, 24
    %v609 = vpop.permute.xlu0 %608
    %v612 = vsel %vm208, %v550, %v591
    %v613 = vsel %vm208, %v555, %v593
    %vm614 = vcmask 130048
    %v615 = vsel %vm614, %v612, %v599
    %v616 = vsel %vm614, %v613, %v601
    %vm617 = vcmask 195584
    %v618 = vsel %vm617, %v615, %v607
    %v619 = vsel %vm617, %v616, %v609
    %v620 = vld [vmem:[#allocation5] sm:$0xff]
    %v621 = vld [vmem:[#allocation5 + $0x8] sm:$0xff]
    %v622 = vld [vmem:[#allocation5 + $0x10] sm:$0xff]
    %v623 = vld [vmem:[#allocation5 + $0x18] sm:$0xff]
    %v624 = vlaneseq
    %v625 = vshrl.u32 %v624, 7
    %v626 = vsub.s32 0, %v625
    %v627 = vrot.slane %v76, %v626
    %v629 = vsel %vm88, %v618, 0
    %v632 = vsel %vm88, %v619, 0
    %634 = vmatprep.subr.mxu0 0.0
    %635 = vmatpush1.msra.mxu0 %v620
    %636 = vmatprep.subr.mxu0 0.0
    %637 = vmatpush1.msra.mxu0 %v621
    %638 = vmatprep.subr.mxu0 0.0
    %639 = vmatpush1.msra.mxu0 %v622
    %640 = vmatprep.subr.mxu0 0.0
    %641 = vmatpush1.msra.mxu0 %v623
    %642 = vmatprep.subr.mxu0 0.0
    %643 = vmatpush1.msra.mxu0 0.0
    %644 = vmatprep.subr.mxu0 0.0
    %645 = vmatpush1.msra.mxu0 0.0
    %646 = vmatprep.subr.mxu0 0.0
    %647 = vmatpush1.msra.mxu0 0.0
    %648 = vmatprep.subr.mxu0 0.0
    %649 = vmatpush1.msra.mxu0 0.0
    %650 = vmatprep.subr.mxu0 0.0
    %651 = vmatpush1.msra.mxu0 0.0
    %652 = vmatprep.subr.mxu0 0.0
    %653 = vmatpush1.msra.mxu0 0.0
    %654 = vmatprep.subr.mxu0 0.0
    %655 = vmatpush1.msra.mxu0 0.0
    %656 = vmatprep.subr.mxu0 0.0
    %657 = vmatpush1.msra.mxu0 0.0
    %658 = vmatprep.subr.mxu0 0.0
    %659 = vmatpush1.msra.mxu0 0.0
    %660 = vmatprep.subr.mxu0 0.0
    %661 = vmatpush1.msra.mxu0 0.0
    %662 = vmatprep.subr.mxu0 0.0
    %663 = vmatpush1.msra.mxu0 0.0
    %664 = vmatprep.subr.mxu0 0.0
    %665 = vmatpush1.msra.mxu0 0.0
    %666 = vmatprep.subr.mxu0 0.0
    %667 = vmatpush1.msra.mxu0 0.0
    %668 = vmatprep.subr.mxu0 0.0
    %669 = vmatpush1.msra.mxu0 0.0
    %670 = vmatprep.subr.mxu0 0.0
    %671 = vmatpush1.msra.mxu0 0.0
    %672 = vmatprep.subr.mxu0 0.0
    %673 = vmatpush1.msra.mxu0 0.0
    %674 = vmatprep.subr.mxu0 0.0
    %675 = vmatpush1.msra.mxu0 0.0
    %676 = vmatprep.subr.mxu0 0.0
    %677 = vmatpush1.msra.mxu0 0.0
    %678 = vmatprep.subr.mxu0 0.0
    %679 = vmatpush1.msra.mxu0 0.0
    %680 = vmatprep.subr.mxu0 0.0
    %681 = vmatpush1.msra.mxu0 0.0
    %682 = vmatprep.subr.mxu0 0.0
    %683 = vmatpush1.msra.mxu0 0.0
    %684 = vmatprep.subr.mxu0 0.0
    %685 = vmatpush1.msra.mxu0 0.0
    %686 = vmatprep.subr.mxu0 0.0
    %687 = vmatpush1.msra.mxu0 0.0
    %688 = vmatprep.subr.mxu0 0.0
    %689 = vmatpush1.msra.mxu0 0.0
    %690 = vmatprep.subr.mxu0 0.0
    %691 = vmatpush1.msra.mxu0 0.0
    %692 = vmatprep.subr.mxu0 0.0
    %693 = vmatpush1.msra.mxu0 0.0
    %694 = vmatprep.subr.mxu0 0.0
    %695 = vmatpush1.msra.mxu0 0.0
    %696 = vmatprep.subr.mxu0 0.0
    %697 = vmatpush1.msra.mxu0 0.0
    %698 = vmatprep.mubr.f32.mxu0 0.0
    %699 = vmatmul.mubr.f32.gmra.mrb[0].mxu0 %v629
    %v700 = vpop.f32.mrb[0].mxu0
    %v701 = vadd.f32 %v627, %v700
    %v702 = vpop.f32.mrb[0].mxu0
    %703 = vmatprep.mubr.f32.mxu0 0.0
    %704 = vmatmul.mubr.f32.gmra.mrb[0].mxu0 %v632
    %v705 = vpop.f32.mrb[0].mxu0
    %v706 = vadd.f32 %v627, %v705
    %v707 = vpop.f32.mrb[0].mxu0
    %708 = vdwg.mxu0
    %v709 = vadd.f32 %v701, %v74
    %v710 = vadd.f32 %v706, %v75
    %v711 = vsel %vm88, %v709, 0.0
    %712 = vadd.xlane.f32.xlu0 %v711
    %v713 = vpop.xlane.xlu0 %712
    %v714 = vsel %vm88, %v710, 0.0
    %715 = vadd.xlane.f32.xlu0 %v714
    %v716 = vpop.xlane.xlu0 %715
    %v717 = vrcp.pop 32.0
    %v718 = vmul.f32 %v713, %v717
    %v719 = vmul.f32 %v716, %v717
    %v720 = vsub.f32 %v709, %v718
    %v721 = vsub.f32 %v710, %v719
    %v722 = vmul.f32 %v720, %v720
    %v723 = vmul.f32 %v721, %v721
    %v724 = vsel %vm88, %v722, 0.0
    %725 = vadd.xlane.f32.xlu0 %v724
    %v726 = vpop.xlane.xlu0 %725
    %v727 = vsel %vm88, %v723, 0.0
    %728 = vadd.xlane.f32.xlu0 %v727
    %v729 = vpop.xlane.xlu0 %728
    %v730 = vmul.f32 %v726, %v717
    %v731 = vmul.f32 %v729, %v717
    %v732 = vadd.f32 %v730, 1e-12
    %v733 = vadd.f32 %v731, 1e-12
    %v734 = vrsqrt.pop %v732
    %v735 = vrsqrt.pop %v733
    %v736 = vmul.f32 %v720, %v734
    %v737 = vmul.f32 %v721, %v735
    %v738 = vlaneseq
    %v739 = vshrl.u32 %v738, 7
    %v740 = vsub.s32 1, %v739
    %v741 = vrot.slane %v76, %v740
    %v742 = vmul.f32 %v736, %v741
    %v743 = vmul.f32 %v737, %v741
    %v744 = vlaneseq
    %v745 = vshrl.u32 %v744, 7
    %v746 = vsub.s32 2, %v745
    %v747 = vrot.slane %v76, %v746
    %v748 = vadd.f32 %v742, %v747
    %v749 = vadd.f32 %v743, %v747
    %v750 = vld [vmem:[#allocation7] sm:$0xff]
    %v751 = vld [vmem:[#allocation7 + $0x8] sm:$0xff]
    %v752 = vld [vmem:[#allocation7 + $0x10] sm:$0xff]
    %v753 = vld [vmem:[#allocation7 + $0x18] sm:$0xff]
    %v754 = vld [vmem:[%s6] sm:$0x1]
    %v756 = vlaneseq
    %v757 = vshrl.u32 %v756, 7
    %v758 = vsub.s32 0, %v757
    %v759 = vrot.slane %v754, %v758
    %v762 = vsel %vm88, %v748, 0
    %v765 = vsel %vm88, %v749, 0
    %767 = vmatprep.subr.mxu0 0.0
    %768 = vmatpush1.msra.mxu0 %v750
    %769 = vmatprep.subr.mxu0 0.0
    %770 = vmatpush1.msra.mxu0 %v751
    %771 = vmatprep.subr.mxu0 0.0
    %772 = vmatpush1.msra.mxu0 %v752
    %773 = vmatprep.subr.mxu0 0.0
    %774 = vmatpush1.msra.mxu0 %v753
    %775 = vmatprep.subr.mxu0 0.0
    %776 = vmatpush1.msra.mxu0 0.0
    %777 = vmatprep.subr.mxu0 0.0
    %778 = vmatpush1.msra.mxu0 0.0
    %779 = vmatprep.subr.mxu0 0.0
    %780 = vmatpush1.msra.mxu0 0.0
    %781 = vmatprep.subr.mxu0 0.0
    %782 = vmatpush1.msra.mxu0 0.0
    %783 = vmatprep.subr.mxu0 0.0
    %784 = vmatpush1.msra.mxu0 0.0
    %785 = vmatprep.subr.mxu0 0.0
    %786 = vmatpush1.msra.mxu0 0.0
    %787 = vmatprep.subr.mxu0 0.0
    %788 = vmatpush1.msra.mxu0 0.0
    %789 = vmatprep.subr.mxu0 0.0
    %790 = vmatpush1.msra.mxu0 0.0
    %791 = vmatprep.subr.mxu0 0.0
    %792 = vmatpush1.msra.mxu0 0.0
    %793 = vmatprep.subr.mxu0 0.0
    %794 = vmatpush1.msra.mxu0 0.0
    %795 = vmatprep.subr.mxu0 0.0
    %796 = vmatpush1.msra.mxu0 0.0
    %797 = vmatprep.subr.mxu0 0.0
    %798 = vmatpush1.msra.mxu0 0.0
    %799 = vmatprep.subr.mxu0 0.0
    %800 = vmatpush1.msra.mxu0 0.0
    %801 = vmatprep.subr.mxu0 0.0
    %802 = vmatpush1.msra.mxu0 0.0
    %803 = vmatprep.subr.mxu0 0.0
    %804 = vmatpush1.msra.mxu0 0.0
    %805 = vmatprep.subr.mxu0 0.0
    %806 = vmatpush1.msra.mxu0 0.0
    %807 = vmatprep.subr.mxu0 0.0
    %808 = vmatpush1.msra.mxu0 0.0
    %809 = vmatprep.subr.mxu0 0.0
    %810 = vmatpush1.msra.mxu0 0.0
    %811 = vmatprep.subr.mxu0 0.0
    %812 = vmatpush1.msra.mxu0 0.0
    %813 = vmatprep.subr.mxu0 0.0
    %814 = vmatpush1.msra.mxu0 0.0
    %815 = vmatprep.subr.mxu0 0.0
    %816 = vmatpush1.msra.mxu0 0.0
    %817 = vmatprep.subr.mxu0 0.0
    %818 = vmatpush1.msra.mxu0 0.0
    %819 = vmatprep.subr.mxu0 0.0
    %820 = vmatpush1.msra.mxu0 0.0
    %821 = vmatprep.subr.mxu0 0.0
    %822 = vmatpush1.msra.mxu0 0.0
    %823 = vmatprep.subr.mxu0 0.0
    %824 = vmatpush1.msra.mxu0 0.0
    %825 = vmatprep.subr.mxu0 0.0
    %826 = vmatpush1.msra.mxu0 0.0
    %827 = vmatprep.subr.mxu0 0.0
    %828 = vmatpush1.msra.mxu0 0.0
    %829 = vmatprep.subr.mxu0 0.0
    %830 = vmatpush1.msra.mxu0 0.0
    %831 = vmatprep.mubr.f32.mxu0 0.0
    %832 = vmatmul.mubr.f32.gmra.mrb[0].mxu0 %v762
    %v833 = vpop.f32.mrb[0].mxu0
    %v834 = vadd.f32 %v759, %v833
    %v835 = vpop.f32.mrb[0].mxu0
    %836 = vmatprep.mubr.f32.mxu0 0.0
    %837 = vmatmul.mubr.f32.gmra.mrb[0].mxu0 %v765
    %v838 = vpop.f32.mrb[0].mxu0
    %v839 = vadd.f32 %v759, %v838
    %v840 = vpop.f32.mrb[0].mxu0
    %841 = vdwg.mxu0
    %v842 = vmax.f32 %v834, 0.0
    %v843 = vmax.f32 %v839, 0.0
    %v844 = vld [vmem:[%s7] sm:$0xff]
    %v845 = vld [vmem:[%s7 + $0x8] sm:$0xff]
    %v846 = vld [vmem:[%s7 + $0x10] sm:$0xff]
    %v847 = vld [vmem:[%s7 + $0x18] sm:$0xff]
    %v848 = vld [vmem:[%s7 + $0x20] sm:$0xff]
    %v849 = vld [vmem:[%s7 + $0x28] sm:$0xff]
    %v850 = vld [vmem:[%s7 + $0x30] sm:$0xff]
    %v851 = vld [vmem:[%s7 + $0x38] sm:$0xff]
    %v852 = vlaneseq
    %v853 = vshrl.u32 %v852, 7
    %v854 = vsub.s32 3, %v853
    %v855 = vrot.slane %v76, %v854
    %v857 = vsel %vm346, %v842, 0
    %v860 = vsel %vm346, %v843, 0
    %862 = vmatprep.subr.mxu0 0.0
    %863 = vmatpush1.msra.mxu0 %v844
    %864 = vmatprep.subr.mxu0 0.0
    %865 = vmatpush1.msra.mxu0 %v845
    %866 = vmatprep.subr.mxu0 0.0
    %867 = vmatpush1.msra.mxu0 %v846
    %868 = vmatprep.subr.mxu0 0.0
    %869 = vmatpush1.msra.mxu0 %v847
    %870 = vmatprep.subr.mxu0 0.0
    %871 = vmatpush1.msra.mxu0 %v848
    %872 = vmatprep.subr.mxu0 0.0
    %873 = vmatpush1.msra.mxu0 %v849
    %874 = vmatprep.subr.mxu0 0.0
    %875 = vmatpush1.msra.mxu0 %v850
    %876 = vmatprep.subr.mxu0 0.0
    %877 = vmatpush1.msra.mxu0 %v851
    %878 = vmatprep.subr.mxu0 0.0
    %879 = vmatpush1.msra.mxu0 0.0
    %880 = vmatprep.subr.mxu0 0.0
    %881 = vmatpush1.msra.mxu0 0.0
    %882 = vmatprep.subr.mxu0 0.0
    %883 = vmatpush1.msra.mxu0 0.0
    %884 = vmatprep.subr.mxu0 0.0
    %885 = vmatpush1.msra.mxu0 0.0
    %886 = vmatprep.subr.mxu0 0.0
    %887 = vmatpush1.msra.mxu0 0.0
    %888 = vmatprep.subr.mxu0 0.0
    %889 = vmatpush1.msra.mxu0 0.0
    %890 = vmatprep.subr.mxu0 0.0
    %891 = vmatpush1.msra.mxu0 0.0
    %892 = vmatprep.subr.mxu0 0.0
    %893 = vmatpush1.msra.mxu0 0.0
    %894 = vmatprep.subr.mxu0 0.0
    %895 = vmatpush1.msra.mxu0 0.0
    %896 = vmatprep.subr.mxu0 0.0
    %897 = vmatpush1.msra.mxu0 0.0
    %898 = vmatprep.subr.mxu0 0.0
    %899 = vmatpush1.msra.mxu0 0.0
    %900 = vmatprep.subr.mxu0 0.0
    %901 = vmatpush1.msra.mxu0 0.0
    %902 = vmatprep.subr.mxu0 0.0
    %903 = vmatpush1.msra.mxu0 0.0
    %904 = vmatprep.subr.mxu0 0.0
    %905 = vmatpush1.msra.mxu0 0.0
    %906 = vmatprep.subr.mxu0 0.0
    %907 = vmatpush1.msra.mxu0 0.0
    %908 = vmatprep.subr.mxu0 0.0
    %909 = vmatpush1.msra.mxu0 0.0
    %910 = vmatprep.subr.mxu0 0.0
    %911 = vmatpush1.msra.mxu0 0.0
    %912 = vmatprep.subr.mxu0 0.0
    %913 = vmatpush1.msra.mxu0 0.0
    %914 = vmatprep.subr.mxu0 0.0
    %915 = vmatpush1.msra.mxu0 0.0
    %916 = vmatprep.subr.mxu0 0.0
    %917 = vmatpush1.msra.mxu0 0.0
    %918 = vmatprep.subr.mxu0 0.0
    %919 = vmatpush1.msra.mxu0 0.0
    %920 = vmatprep.subr.mxu0 0.0
    %921 = vmatpush1.msra.mxu0 0.0
    %922 = vmatprep.subr.mxu0 0.0
    %923 = vmatpush1.msra.mxu0 0.0
    %924 = vmatprep.subr.mxu0 0.0
    %925 = vmatpush1.msra.mxu0 0.0
    %926 = vmatprep.mubr.f32.mxu0 0.0
    %927 = vmatmul.mubr.f32.gmra.mrb[0].mxu0 %v857
    %v928 = vpop.f32.mrb[0].mxu0
    %v929 = vadd.f32 %v855, %v928
    %v930 = vpop.f32.mrb[0].mxu0
    %931 = vmatprep.mubr.f32.mxu0 0.0
    %932 = vmatmul.mubr.f32.gmra.mrb[0].mxu0 %v860
    %v933 = vpop.f32.mrb[0].mxu0
    %v934 = vadd.f32 %v855, %v933
    %v935 = vpop.f32.mrb[0].mxu0
    %936 = vdwg.mxu0
    %v937 = vadd.f32 %v929, %v748
    %v938 = vadd.f32 %v934, %v749
    %v939 = vsel %vm88, %v937, 0.0
    %940 = vadd.xlane.f32.xlu0 %v939
    %v941 = vpop.xlane.xlu0 %940
    %v942 = vsel %vm88, %v938, 0.0
    %943 = vadd.xlane.f32.xlu0 %v942
    %v944 = vpop.xlane.xlu0 %943
    %v945 = vmul.f32 %v941, %v717
    %v946 = vmul.f32 %v944, %v717
    %v947 = vsub.f32 %v937, %v945
    %v948 = vsub.f32 %v938, %v946
    %v949 = vmul.f32 %v947, %v947
    %v950 = vmul.f32 %v948, %v948
    %v951 = vsel %vm88, %v949, 0.0
    %952 = vadd.xlane.f32.xlu0 %v951
    %v953 = vpop.xlane.xlu0 %952
    %v954 = vsel %vm88, %v950, 0.0
    %955 = vadd.xlane.f32.xlu0 %v954
    %v956 = vpop.xlane.xlu0 %955
    %v957 = vmul.f32 %v953, %v717
    %v958 = vmul.f32 %v956, %v717
    %v959 = vadd.f32 %v957, 1e-12
    %v960 = vadd.f32 %v958, 1e-12
    %v961 = vrsqrt.pop %v959
    %v962 = vrsqrt.pop %v960
    %v963 = vmul.f32 %v947, %v961
    %v964 = vmul.f32 %v948, %v962
    %v965 = vlaneseq
    %v966 = vshrl.u32 %v965, 7
    %v967 = vsub.s32 4, %v966
    %v968 = vrot.slane %v76, %v967
    %v969 = vmul.f32 %v963, %v968
    %v970 = vmul.f32 %v964, %v968
    %v971 = vlaneseq
    %v972 = vshrl.u32 %v971, 7
    %v973 = vsub.s32 5, %v972
    %v974 = vrot.slane %v76, %v973
    %v975 = vadd.f32 %v969, %v974
    %v976 = vadd.f32 %v970, %v974
    %977 = vst.msk [vmem:[#allocation8] sm:$0xff] %vm88, %v975
    %978 = vst.msk [vmem:[#allocation8 + $0x8] sm:$0xff] %vm88, %v976
    // Predicated region
    $region50: #{encoder_layer.1} parent=1 // pred_check
      _
    $region51: #{encoder_layer.1} parent=1 // pred_check_branch
      %980 = sbr.rel (0) target = $region53
    $region52: #{encoder_layer.1} parent=1 // pred_region
      %s982 = ssub.s32 256, 256
      %983 = vsyncadd [#allocation4], %s982
      %s984 = sshll.u32 [#allocation8], 4
      %s985 = int_to_ptr.vmem [resolvable:$true] %s984
      %990 = dma.vmem_to_hbm [thread:$0]  %s985, 256, %s9, [#allocation4], 128, 128, 8
    $region53: #{encoder_layer.1} parent=1 // pred_fallthru
      _
    // Predicated region
    $region54: #{encoder_layer.1} parent=1 // pred_check
      _
    $region55: #{encoder_layer.1} parent=1 // pred_check_branch
      %992 = sbr.rel (0) target = $region57
    $region56: #{encoder_layer.1} parent=1 // pred_region
      %993 = dma.done [#allocation4], 256
    $region57: #{encoder_layer.1} parent=1 // pred_fallthru
      _
    %994 = vsyncpa [#allocation3], 1
    %995 = vsyncpa [#allocation6], 1
    %996 = vsyncpa [#allocation4], 1

</llo_original>
